<compile_context>
chip_gen: v7x
topology: tpu7x:2x2x1
jax: 0.10.0
libtpu: 0.0.40
codegen_flags: <defaults>
</compile_context>

<pallas_src>
import jax
import jax.numpy as jnp
from jax import lax
from jax.experimental import pallas as pl
from jax.experimental.pallas import tpu as pltpu

OUT_LANES = 128
# Lane rotates only pay off (and are only exercised) when the plane spans at
# least one full vreg of lanes.
_LANE_ROLL_MIN_W = 128


def _lane_pack(vals):
    """Pack a few f32 scalars into lanes 0..k-1 of a (1, 128) f32 vector."""
    lane = lax.broadcasted_iota(jnp.int32, (1, OUT_LANES), 1)
    out = jnp.zeros((1, OUT_LANES), jnp.float32)
    for i, v in enumerate(vals):
        out = out + jnp.where(lane == i, jnp.asarray(v, jnp.float32), 0.0)
    return out


def _rows_strided(ref, start, num, stride):
    """Sublane-strided read of rows start, start+stride, ... from a 2-D ref."""
    if num == 1:
        return ref[pl.ds(start, 1), :]
    return ref[pl.ds(start, num, stride=stride), :]


def _grad_x_sum(d, m, step, col):
    """sum_{rows, j on grid} |d[:, j+step] - d[:, j]| * m[:, j+step] * m[:, j].

    `d` / `m` are row-decimated planes of full width W; the column subsample
    grid (j % step == 0, j + step < W) is applied via the hoisted `col` iota.
    """
    W = d.shape[-1]
    if W <= step:
        return jnp.float32(0.0)
    if W >= _LANE_ROLL_MIN_W and W % 128 == 0:
        # XLU lane rotate instead of a misaligned slice copy; wrapped columns
        # are zeroed by the selection weight below.
        d_n = pltpu.roll(d, W - step, 1)              # d_n[:, j] = d[:, j+step]
        g = jnp.abs(d_n - d)
        if m is not None:
            g = g * (pltpu.roll(m, W - step, 1) * m)
        sel = col + step <= W - 1
        if step > 1:
            sel = sel & ((col & (step - 1)) == 0)
        return jnp.sum(jnp.where(sel, g, 0.0))
    # Sub-vreg width: slice pair (left slice is offset-0 aligned).
    g = jnp.abs(d[:, step:] - d[:, :-step])
    if m is not None:
        g = g * (m[:, step:] * m[:, :-step])
    if step > 1:
        sel = (col[:, : W - step] & (step - 1)) == 0
        g = jnp.where(sel, g, 0.0)
    return jnp.sum(g)


# ----------------------------------------------------------------------------
# Fused kernel: per-batch 2x2 scale/shift solve + MSE numerator + gradient
# numerators / mask counts for every octave, in ONE pass over the inputs.
# ----------------------------------------------------------------------------
def _make_fused_kernel(H, W, scales, has_mask):
    def kernel(*refs):
        if has_mask:
            p_ref, t_ref, m_ref, out_ref, diff_scr, m_scr = refs
        else:
            p_ref, t_ref, out_ref, diff_scr = refs
            m_scr = None

        p = p_ref[...].astype(jnp.float32)            # (H, W)
        t = t_ref[...].astype(jnp.float32)

        if has_mask:
            m = m_ref[...].astype(jnp.float32)
            mp = m * p                                 # CSE: a00 / a01 / b0
            a00 = jnp.sum(mp * p)
            a01 = jnp.sum(mp)
            a11 = jnp.sum(m)
            b0 = jnp.sum(mp * t)
            b1 = jnp.sum(m * t)
        else:
            m = None
            a00 = jnp.sum(p * p)
            a01 = jnp.sum(p)
            a11 = jnp.float32(H * W)
            b0 = jnp.sum(p * t)
            b1 = jnp.sum(t)

        # Closed-form 2x2 solve; the exact `det != 0` guard matches the
        # PyTorch reference.
        det = a00 * a11 - a01 * a01
        valid = det != 0.0
        safe_det = jnp.where(valid, det, 1.0)
        scale = jnp.where(valid, (a11 * b0 - a01 * b1) / safe_det, 0.0)
        shift = jnp.where(valid, (-a01 * b0 + a00 * b1) / safe_det, 0.0)

        res = scale * p + shift - t
        if has_mask:
            diff = m * res                             # reused by MSE + grads
            mse_num = jnp.sum(diff * res)              # == sum(m * res * res)
        else:
            diff = res
            mse_num = jnp.sum(res * res)

        # Persist full-res diff (and mask) into f32 scratch so each octave can
        # be row-decimated with cheap sublane-strided VMEM reads below.
        diff_scr[...] = diff
        if has_mask:
            m_scr[...] = m

        # Single hoisted column-index plane, reused by every scale.
        col = lax.broadcasted_iota(jnp.int32, (1, W), 1)

        packed = [mse_num, a11]
        for s in range(scales):
            step = 1 << s
            hs = -(-H // step)                         # rows on the 2^s grid
            ws = -(-W // step)                         # cols on the 2^s grid

            if s == 0:
                d0, m0 = diff, m
                if H > 1:                              # stride-1 y gradient
                    dy = jnp.abs(diff[1:, :] - diff[:-1, :])
                    if has_mask:
                        dy = dy * (m[1:, :] * m[:-1, :])
                    gy = jnp.sum(dy)
                else:
                    gy = jnp.float32(0.0)
                ms_s = a11
            else:
                # Row-decimated planes straight from scratch (stride = step).
                d0 = _rows_strided(diff_scr, 0, hs, step)
                m0 = _rows_strided(m_scr, 0, hs, step) if has_mask else None
                csel = (col & (step - 1)) == 0         # column subsample grid
                if hs > 1:
                    d1 = _rows_strided(diff_scr, step, hs - 1, step)
                    dy = jnp.abs(d1 - d0[: hs - 1, :])
                    if has_mask:
                        m1 = _rows_strided(m_scr, step, hs - 1, step)
                        dy = dy * (m1 * m0[: hs - 1, :])
                    gy = jnp.sum(jnp.where(csel, dy, 0.0))
                else:
                    gy = jnp.float32(0.0)
                if has_mask:
                    ms_s = jnp.sum(jnp.where(csel, m0, 0.0))
                else:
                    ms_s = jnp.float32(hs * ws)

            gx = _grad_x_sum(d0, m0, step, col)
            packed += [gx + gy, ms_s]

        # TODO(synk): if a bundle profile still shows XLU saturation after the
        # decimation, push the big cross-lane sums onto the idle MXU via a
        # ones-vector dot.
        out_ref[...] = _lane_pack(packed)

    return kernel


def _fused_stats(pred, targ, mask, scales):
    B, H, W = pred.shape
    has_mask = mask is not None
    kernel = _make_fused_kernel(H, W, scales, has_mask)
    n_in = 3 if has_mask else 2

    # Scratch: full-res f32 diff (+ mask) planes for the strided octave reads.
    scratch = [pltpu.VMEM((H, W), jnp.float32)]
    if has_mask:
        scratch.append(pltpu.VMEM((H, W), jnp.float32))

    # Explicit scoped-VMEM budget: double-buffered inputs + scratch + headroom
    # for live intermediates, clamped to stay inside every generation's
    # physical VMEM.
    in_bytes = H * W * (pred.dtype.itemsize + targ.dtype.itemsize
                        + (mask.dtype.itemsize if has_mask else 0))
    est = 2 * in_bytes + 4 * H * W * len(scratch) + 32 * H * W + (1 << 20)
    vmem_limit = int(min(96 << 20, max(32 << 20, est)))

    call = pl.pallas_call(
        kernel,
        out_shape=jax.ShapeDtypeStruct((B, 1, OUT_LANES), jnp.float32),
        grid_spec=pltpu.PrefetchScalarGridSpec(
            num_scalar_prefetch=0,
            grid=(B,),
            in_specs=[pl.BlockSpec((None, H, W), lambda b: (b, 0, 0))] * n_in,
            out_specs=pl.BlockSpec((None, 1, OUT_LANES), lambda b: (b, 0, 0)),
            scratch_shapes=scratch,
        ),
        compiler_params=pltpu.CompilerParams(
            dimension_semantics=("parallel",),
            vmem_limit_bytes=vmem_limit),
    )
    if has_mask:
        return call(pred, targ, mask)
    return call(pred, targ)


# ----------------------------------------------------------------------------
# Forward pass (matches ScaleAndShiftInvariantLoss(alpha=0.5, scales=4,
# reduction='batch-based').forward)
# ----------------------------------------------------------------------------
def scale_and_shift_invariant_loss(prediction, target, mask=None,
                                   alpha=0.5, scales=4):
    # NCHW -> (B, H, W); values are cast to f32 inside the kernel so bf16
    # inputs ship narrow.
    pred = prediction[:, 0] if prediction.ndim == 4 else prediction
    targ = target[:, 0] if target.ndim == 4 else target
    if mask is not None:
        if mask.ndim == 4:
            mask = mask[:, 0]
        if mask.dtype == jnp.bool_:
            # Ship the mask narrow (half the HBM bytes of f32); the f32 cast
            # happens inside the kernel. Float masks keep their dtype since
            # the reference treats the mask as a multiplicative weight.
            mask = mask.astype(jnp.bfloat16)

    # TODO(synk): for multi-megapixel planes (esp. v7x, 64 MiB VMEM) add an H
    # tiling with a two-pass stats/residual structure; subsample selection
    # must then use global row indices (tile offset + local index).
    # TODO(synk): for B == 1 on v7x, add a second "parallel" spatial split so
    # both TensorCores are used.
    # TODO(synk): for tiny spatial dims (W < 128) fold several batch elements
    # per grid step to restore lane density and amortize per-step overhead.
    stats = _fused_stats(pred, targ, mask, scales)      # (B, 1, 128)

    mse_num = stats[:, 0, 0]                            # sum(m * res^2) per b
    M = stats[:, 0, 1]                                  # sum(m) per b
    div = 2.0 * jnp.sum(M)                              # mse_loss uses 2*M
    total = jnp.where(div == 0.0, 0.0,
                      jnp.sum(mse_num) / jnp.where(div == 0.0, 1.0, div))

    if alpha > 0:
        reg = jnp.float32(0.0)
        for s in range(scales):
            num = stats[:, 0, 2 + 2 * s]
            Ms = stats[:, 0, 3 + 2 * s]
            d = jnp.sum(Ms)
            reg = reg + jnp.where(d == 0.0, 0.0,
                                  jnp.sum(num) / jnp.where(d == 0.0, 1.0, d))
        total = total + alpha * reg
    return total


# ----------------------------------------------------------------------------
# Pure-JAX reference (mirrors the PyTorch module) for a sanity check.
# ----------------------------------------------------------------------------
def _reference(prediction, target, mask=None, alpha=0.5, scales=4):
    p = prediction[:, 0].astype(jnp.float32)
    t = target[:, 0].astype(jnp.float32)
    if mask is None:
        m = jnp.ones_like(t)
    else:
        m = (mask[:, 0] if mask.ndim == 4 else mask).astype(jnp.float32)

    a00 = jnp.sum(m * p * p, (1, 2))
    a01 = jnp.sum(m * p, (1, 2))
    a11 = jnp.sum(m, (1, 2))
    b0 = jnp.sum(m * p * t, (1, 2))
    b1 = jnp.sum(m * t, (1, 2))
    det = a00 * a11 - a01 * a01
    valid = det != 0.0
    sd = jnp.where(valid, det, 1.0)
    x0 = jnp.where(valid, (a11 * b0 - a01 * b1) / sd, 0.0)
    x1 = jnp.where(valid, (-a01 * b0 + a00 * b1) / sd, 0.0)
    pssi = x0[:, None, None] * p + x1[:, None, None]

    res = pssi - t
    il = jnp.sum(m * res * res, (1, 2))
    M = jnp.sum(m, (1, 2))
    div = jnp.sum(2 * M)
    total = jnp.where(div == 0, 0.0, jnp.sum(il) / jnp.where(div == 0, 1.0, div))

    for s in range(scales):
        st = 2 ** s
        ps, ts, ms = pssi[:, ::st, ::st], t[:, ::st, ::st], m[:, ::st, ::st]
        Ms = jnp.sum(ms, (1, 2))
        d = ms * (ps - ts)
        gx = jnp.abs(d[:, :, 1:] - d[:, :, :-1]) * (ms[:, :, 1:] * ms[:, :, :-1])
        gy = jnp.abs(d[:, 1:, :] - d[:, :-1, :]) * (ms[:, 1:, :] * ms[:, :-1, :])
        il = jnp.sum(gx, (1, 2)) + jnp.sum(gy, (1, 2))
        dd = jnp.sum(Ms)
        total = total + alpha * jnp.where(dd == 0, 0.0,
                                          jnp.sum(il) / jnp.where(dd == 0, 1.0, dd))
    return total


if __name__ == "__main__":
    key = jax.random.PRNGKey(0)
    k1, k2, k3 = jax.random.split(key, 3)
    B, C, H, W = 2, 1, 16, 16
    prediction = jax.random.normal(k1, (B, C, H, W), jnp.float32)
    target = jax.random.normal(k2, (B, C, H, W), jnp.float32)

    fn = jax.jit(scale_and_shift_invariant_loss)

    # mask=None (specialized no-mask kernel variant, ~1/3 less HBM traffic).
    loss = fn(prediction, target)
    jax.block_until_ready(loss)
    ref = _reference(prediction, target)
    assert jnp.allclose(loss, ref, rtol=1e-3, atol=1e-5), (loss, ref)

    # bool mask -> shipped as bf16 (narrow HBM path).
    mask_bool = jax.random.uniform(k3, (B, C, H, W)) > 0.3
    loss_b = fn(prediction, target, mask_bool)
    jax.block_until_ready(loss_b)
    ref_b = _reference(prediction, target, mask_bool)
    assert jnp.allclose(loss_b, ref_b, rtol=1e-3, atol=1e-5), (loss_b, ref_b)

    # explicit float (binary) mask path.
    mask_f = mask_bool.astype(jnp.float32)
    loss_f = fn(prediction, target, mask_f)
    jax.block_until_ready(loss_f)
    ref_f = _reference(prediction, target, mask_f)
    assert jnp.allclose(loss_f, ref_f, rtol=1e-3, atol=1e-5), (loss_f, ref_f)

    print("KERNEL_OK")
</pallas_src>

<mosaic_0001>
module attributes {stable_mosaic.version = 11 : i64} {
  func.func @kernel(%arg0: i32, %arg1: memref<1x16x16xf32, #tpu.memory_space<vmem>>, %arg2: memref<1x16x16xf32, #tpu.memory_space<vmem>>, %arg3: memref<1x1x128xf32, #tpu.memory_space<vmem>>, %arg4: memref<16x16xf32, #tpu.memory_space<vmem>>) attributes {dimension_semantics = [#tpu.dimension_semantics<parallel>], iteration_bounds = array<i64: 2>, scalar_prefetch = 0 : i64, scratch_operands = 1 : i64, tpu.core_type = #tpu.core_type<tc>, window_params = [{transform_indices = @transform_0, window_bounds = array<i64: 1, 16, 16>}, {transform_indices = @transform_1, window_bounds = array<i64: 1, 16, 16>}, {transform_indices = @transform_2, window_bounds = array<i64: 1, 1, 128>}]} {
    %c0 = arith.constant 0 : index
    %c0_0 = arith.constant 0 : index
    %c0_1 = arith.constant 0 : index
    %0 = vector.load %arg1[%c0, %c0_0, %c0_1] : memref<1x16x16xf32, #tpu.memory_space<vmem>>, vector<1x16x16xf32>
    %1 = vector.shape_cast %0 : vector<1x16x16xf32> to vector<16x16xf32>
    %c0_2 = arith.constant 0 : index
    %c0_3 = arith.constant 0 : index
    %c0_4 = arith.constant 0 : index
    %2 = vector.load %arg2[%c0_2, %c0_3, %c0_4] : memref<1x16x16xf32, #tpu.memory_space<vmem>>, vector<1x16x16xf32>
    %3 = vector.shape_cast %2 : vector<1x16x16xf32> to vector<16x16xf32>
    %4 = arith.mulf %1, %1 : vector<16x16xf32>
    %5 = vector.shape_cast %4 : vector<16x16xf32> to vector<1x16x16xf32>
    %cst = arith.constant dense<0.000000e+00> : vector<1xf32>
    %6 = vector.multi_reduction <add>, %5, %cst [1, 2] : vector<1x16x16xf32> to vector<1xf32>
    %7 = vector.shape_cast %6 : vector<1xf32> to vector<1x1x1xf32>
    %8 = vector.extract %7[0, 0, 0] : f32 from vector<1x1x1xf32>
    %9 = vector.shape_cast %1 : vector<16x16xf32> to vector<1x16x16xf32>
    %cst_5 = arith.constant dense<0.000000e+00> : vector<1xf32>
    %10 = vector.multi_reduction <add>, %9, %cst_5 [1, 2] : vector<1x16x16xf32> to vector<1xf32>
    %11 = vector.shape_cast %10 : vector<1xf32> to vector<1x1x1xf32>
    %12 = vector.extract %11[0, 0, 0] : f32 from vector<1x1x1xf32>
    %13 = arith.mulf %1, %3 : vector<16x16xf32>
    %14 = vector.shape_cast %13 : vector<16x16xf32> to vector<1x16x16xf32>
    %cst_6 = arith.constant dense<0.000000e+00> : vector<1xf32>
    %15 = vector.multi_reduction <add>, %14, %cst_6 [1, 2] : vector<1x16x16xf32> to vector<1xf32>
    %16 = vector.shape_cast %15 : vector<1xf32> to vector<1x1x1xf32>
    %17 = vector.extract %16[0, 0, 0] : f32 from vector<1x1x1xf32>
    %18 = vector.shape_cast %3 : vector<16x16xf32> to vector<1x16x16xf32>
    %cst_7 = arith.constant dense<0.000000e+00> : vector<1xf32>
    %19 = vector.multi_reduction <add>, %18, %cst_7 [1, 2] : vector<1x16x16xf32> to vector<1xf32>
    %20 = vector.shape_cast %19 : vector<1xf32> to vector<1x1x1xf32>
    %21 = vector.extract %20[0, 0, 0] : f32 from vector<1x1x1xf32>
    %cst_8 = arith.constant 2.560000e+02 : f32
    %22 = arith.mulf %8, %cst_8 : f32
    %23 = arith.mulf %12, %12 : f32
    %24 = arith.subf %22, %23 : f32
    %cst_9 = arith.constant 0.000000e+00 : f32
    %25 = arith.cmpf one, %24, %cst_9 : f32
    %cst_10 = arith.constant 1.000000e+00 : f32
    %26 = arith.select %25, %24, %cst_10 : f32
    %cst_11 = arith.constant 2.560000e+02 : f32
    %27 = arith.mulf %cst_11, %17 : f32
    %28 = arith.mulf %12, %21 : f32
    %29 = arith.subf %27, %28 : f32
    %30 = arith.divf %29, %26 : f32
    %cst_12 = arith.constant 0.000000e+00 : f32
    %31 = arith.select %25, %30, %cst_12 : f32
    %cst_13 = arith.constant 0.000000e+00 : f32
    %32 = arith.subf %cst_13, %12 : f32
    %33 = arith.mulf %32, %17 : f32
    %34 = arith.mulf %8, %21 : f32
    %35 = arith.addf %33, %34 : f32
    %36 = arith.divf %35, %26 : f32
    %cst_14 = arith.constant 0.000000e+00 : f32
    %37 = arith.select %25, %36, %cst_14 : f32
    %38 = vector.broadcast %31 : f32 to vector<16x16xf32>
    %39 = arith.mulf %38, %1 : vector<16x16xf32>
    %40 = vector.broadcast %37 : f32 to vector<16x16xf32>
    %41 = arith.addf %39, %40 : vector<16x16xf32>
    %42 = arith.subf %41, %3 : vector<16x16xf32>
    %43 = arith.mulf %42, %42 : vector<16x16xf32>
    %44 = vector.shape_cast %43 : vector<16x16xf32> to vector<1x16x16xf32>
    %cst_15 = arith.constant dense<0.000000e+00> : vector<1xf32>
    %45 = vector.multi_reduction <add>, %44, %cst_15 [1, 2] : vector<1x16x16xf32> to vector<1xf32>
    %46 = vector.shape_cast %45 : vector<1xf32> to vector<1x1x1xf32>
    %47 = vector.extract %46[0, 0, 0] : f32 from vector<1x1x1xf32>
    %c0_16 = arith.constant 0 : index
    %c0_17 = arith.constant 0 : index
    %48 = vector.load %arg4[%c0_16, %c0_17] : memref<16x16xf32, #tpu.memory_space<vmem>>, vector<16x16xf32>
    tpu.vector_store %arg4[%c0_16, %c0_17], %42 {strides = array<i32>} : memref<16x16xf32, #tpu.memory_space<vmem>>, vector<16x16xf32>,
    %49 = tpu.iota {dimensions = array<i32: 1>} : vector<1x16xi32>
    %50 = vector.extract_strided_slice %42 {offsets = [1, 0], sizes = [15, 16], strides = [1, 1]} : vector<16x16xf32> to vector<15x16xf32>
    %51 = vector.extract_strided_slice %42 {offsets = [0, 0], sizes = [15, 16], strides = [1, 1]} : vector<16x16xf32> to vector<15x16xf32>
    %52 = arith.subf %50, %51 : vector<15x16xf32>
    %53 = math.absf %52 : vector<15x16xf32>
    %54 = vector.shape_cast %53 : vector<15x16xf32> to vector<1x15x16xf32>
    %cst_18 = arith.constant dense<0.000000e+00> : vector<1xf32>
    %55 = vector.multi_reduction <add>, %54, %cst_18 [1, 2] : vector<1x15x16xf32> to vector<1xf32>
    %56 = vector.shape_cast %55 : vector<1xf32> to vector<1x1x1xf32>
    %57 = vector.extract %56[0, 0, 0] : f32 from vector<1x1x1xf32>
    %58 = vector.extract_strided_slice %42 {offsets = [0, 1], sizes = [16, 15], strides = [1, 1]} : vector<16x16xf32> to vector<16x15xf32>
    %59 = vector.extract_strided_slice %42 {offsets = [0, 0], sizes = [16, 15], strides = [1, 1]} : vector<16x16xf32> to vector<16x15xf32>
    %60 = arith.subf %58, %59 : vector<16x15xf32>
    %61 = math.absf %60 : vector<16x15xf32>
    %62 = vector.shape_cast %61 : vector<16x15xf32> to vector<1x16x15xf32>
    %cst_19 = arith.constant dense<0.000000e+00> : vector<1xf32>
    %63 = vector.multi_reduction <add>, %62, %cst_19 [1, 2] : vector<1x16x15xf32> to vector<1xf32>
    %64 = vector.shape_cast %63 : vector<1xf32> to vector<1x1x1xf32>
    %65 = vector.extract %64[0, 0, 0] : f32 from vector<1x1x1xf32>
    %66 = arith.addf %65, %57 : f32
    %c0_20 = arith.constant 0 : index
    %c0_21 = arith.constant 0 : index
    %67 = tpu.strided_load %arg4[%c0_20, %c0_21] {strides = array<i32: 2, 1>} : memref<16x16xf32, #tpu.memory_space<vmem>>, vector<8x16xf32>
    %c1_i32 = arith.constant 1 : i32
    %68 = vector.broadcast %c1_i32 : i32 to vector<1x16xi32>
    %69 = arith.andi %49, %68 : vector<1x16xi32>
    %c0_i32 = arith.constant 0 : i32
    %70 = vector.broadcast %c0_i32 : i32 to vector<1x16xi32>
    %71 = arith.cmpi eq, %69, %70 : vector<1x16xi32>
    %c2 = arith.constant 2 : index
    %c0_22 = arith.constant 0 : index
    %72 = tpu.strided_load %arg4[%c2, %c0_22] {strides = array<i32: 2, 1>} : memref<16x16xf32, #tpu.memory_space<vmem>>, vector<7x16xf32>
    %73 = vector.extract_strided_slice %67 {offsets = [0, 0], sizes = [7, 16], strides = [1, 1]} : vector<8x16xf32> to vector<7x16xf32>
    %74 = arith.subf %72, %73 : vector<7x16xf32>
    %75 = math.absf %74 : vector<7x16xf32>
    %cst_23 = arith.constant 0.000000e+00 : f32
    %76 = vector.shape_cast %71 : vector<1x16xi1> to vector<1x16xi1>
    %77 = vector.broadcast %76 : vector<1x16xi1> to vector<7x16xi1>
    %78 = vector.broadcast %cst_23 : f32 to vector<7x16xf32>
    %79 = arith.select %77, %75, %78 : vector<7x16xi1>, vector<7x16xf32>
    %80 = vector.shape_cast %79 : vector<7x16xf32> to vector<1x7x16xf32>
    %cst_24 = arith.constant dense<0.000000e+00> : vector<1xf32>
    %81 = vector.multi_reduction <add>, %80, %cst_24 [1, 2] : vector<1x7x16xf32> to vector<1xf32>
    %82 = vector.shape_cast %81 : vector<1xf32> to vector<1x1x1xf32>
    %83 = vector.extract %82[0, 0, 0] : f32 from vector<1x1x1xf32>
    %84 = vector.extract_strided_slice %67 {offsets = [0, 2], sizes = [8, 14], strides = [1, 1]} : vector<8x16xf32> to vector<8x14xf32>
    %85 = vector.extract_strided_slice %67 {offsets = [0, 0], sizes = [8, 14], strides = [1, 1]} : vector<8x16xf32> to vector<8x14xf32>
    %86 = arith.subf %84, %85 : vector<8x14xf32>
    %87 = math.absf %86 : vector<8x14xf32>
    %88 = vector.extract_strided_slice %49 {offsets = [0, 0], sizes = [1, 14], strides = [1, 1]} : vector<1x16xi32> to vector<1x14xi32>
    %c1_i32_25 = arith.constant 1 : i32
    %89 = vector.broadcast %c1_i32_25 : i32 to vector<1x14xi32>
    %90 = arith.andi %88, %89 : vector<1x14xi32>
    %c0_i32_26 = arith.constant 0 : i32
    %91 = vector.broadcast %c0_i32_26 : i32 to vector<1x14xi32>
    %92 = arith.cmpi eq, %90, %91 : vector<1x14xi32>
    %cst_27 = arith.constant 0.000000e+00 : f32
    %93 = vector.shape_cast %92 : vector<1x14xi1> to vector<1x14xi1>
    %94 = vector.broadcast %93 : vector<1x14xi1> to vector<8x14xi1>
    %95 = vector.broadcast %cst_27 : f32 to vector<8x14xf32>
    %96 = arith.select %94, %87, %95 : vector<8x14xi1>, vector<8x14xf32>
    %97 = vector.shape_cast %96 : vector<8x14xf32> to vector<1x8x14xf32>
    %cst_28 = arith.constant dense<0.000000e+00> : vector<1xf32>
    %98 = vector.multi_reduction <add>, %97, %cst_28 [1, 2] : vector<1x8x14xf32> to vector<1xf32>
    %99 = vector.shape_cast %98 : vector<1xf32> to vector<1x1x1xf32>
    %100 = vector.extract %99[0, 0, 0] : f32 from vector<1x1x1xf32>
    %101 = arith.addf %100, %83 : f32
    %c0_29 = arith.constant 0 : index
    %c0_30 = arith.constant 0 : index
    %102 = tpu.strided_load %arg4[%c0_29, %c0_30] {strides = array<i32: 4, 1>} : memref<16x16xf32, #tpu.memory_space<vmem>>, vector<4x16xf32>
    %c3_i32 = arith.constant 3 : i32
    %103 = vector.broadcast %c3_i32 : i32 to vector<1x16xi32>
    %104 = arith.andi %49, %103 : vector<1x16xi32>
    %c0_i32_31 = arith.constant 0 : i32
    %105 = vector.broadcast %c0_i32_31 : i32 to vector<1x16xi32>
    %106 = arith.cmpi eq, %104, %105 : vector<1x16xi32>
    %c4 = arith.constant 4 : index
    %c0_32 = arith.constant 0 : index
    %107 = tpu.strided_load %arg4[%c4, %c0_32] {strides = array<i32: 4, 1>} : memref<16x16xf32, #tpu.memory_space<vmem>>, vector<3x16xf32>
    %108 = vector.extract_strided_slice %102 {offsets = [0, 0], sizes = [3, 16], strides = [1, 1]} : vector<4x16xf32> to vector<3x16xf32>
    %109 = arith.subf %107, %108 : vector<3x16xf32>
    %110 = math.absf %109 : vector<3x16xf32>
    %cst_33 = arith.constant 0.000000e+00 : f32
    %111 = vector.shape_cast %106 : vector<1x16xi1> to vector<1x16xi1>
    %112 = vector.broadcast %111 : vector<1x16xi1> to vector<3x16xi1>
    %113 = vector.broadcast %cst_33 : f32 to vector<3x16xf32>
    %114 = arith.select %112, %110, %113 : vector<3x16xi1>, vector<3x16xf32>
    %115 = vector.shape_cast %114 : vector<3x16xf32> to vector<1x3x16xf32>
    %cst_34 = arith.constant dense<0.000000e+00> : vector<1xf32>
    %116 = vector.multi_reduction <add>, %115, %cst_34 [1, 2] : vector<1x3x16xf32> to vector<1xf32>
    %117 = vector.shape_cast %116 : vector<1xf32> to vector<1x1x1xf32>
    %118 = vector.extract %117[0, 0, 0] : f32 from vector<1x1x1xf32>
    %119 = vector.extract_strided_slice %102 {offsets = [0, 4], sizes = [4, 12], strides = [1, 1]} : vector<4x16xf32> to vector<4x12xf32>
    %120 = vector.extract_strided_slice %102 {offsets = [0, 0], sizes = [4, 12], strides = [1, 1]} : vector<4x16xf32> to vector<4x12xf32>
    %121 = arith.subf %119, %120 : vector<4x12xf32>
    %122 = math.absf %121 : vector<4x12xf32>
    %123 = vector.extract_strided_slice %49 {offsets = [0, 0], sizes = [1, 12], strides = [1, 1]} : vector<1x16xi32> to vector<1x12xi32>
    %c3_i32_35 = arith.constant 3 : i32
    %124 = vector.broadcast %c3_i32_35 : i32 to vector<1x12xi32>
    %125 = arith.andi %123, %124 : vector<1x12xi32>
    %c0_i32_36 = arith.constant 0 : i32
    %126 = vector.broadcast %c0_i32_36 : i32 to vector<1x12xi32>
    %127 = arith.cmpi eq, %125, %126 : vector<1x12xi32>
    %cst_37 = arith.constant 0.000000e+00 : f32
    %128 = vector.shape_cast %127 : vector<1x12xi1> to vector<1x12xi1>
    %129 = vector.broadcast %128 : vector<1x12xi1> to vector<4x12xi1>
    %130 = vector.broadcast %cst_37 : f32 to vector<4x12xf32>
    %131 = arith.select %129, %122, %130 : vector<4x12xi1>, vector<4x12xf32>
    %132 = vector.shape_cast %131 : vector<4x12xf32> to vector<1x4x12xf32>
    %cst_38 = arith.constant dense<0.000000e+00> : vector<1xf32>
    %133 = vector.multi_reduction <add>, %132, %cst_38 [1, 2] : vector<1x4x12xf32> to vector<1xf32>
    %134 = vector.shape_cast %133 : vector<1xf32> to vector<1x1x1xf32>
    %135 = vector.extract %134[0, 0, 0] : f32 from vector<1x1x1xf32>
    %136 = arith.addf %135, %118 : f32
    %c0_39 = arith.constant 0 : index
    %c0_40 = arith.constant 0 : index
    %137 = tpu.strided_load %arg4[%c0_39, %c0_40] {strides = array<i32: 8, 1>} : memref<16x16xf32, #tpu.memory_space<vmem>>, vector<2x16xf32>
    %c7_i32 = arith.constant 7 : i32
    %138 = vector.broadcast %c7_i32 : i32 to vector<1x16xi32>
    %139 = arith.andi %49, %138 : vector<1x16xi32>
    %c0_i32_41 = arith.constant 0 : i32
    %140 = vector.broadcast %c0_i32_41 : i32 to vector<1x16xi32>
    %141 = arith.cmpi eq, %139, %140 : vector<1x16xi32>
    %c8 = arith.constant 8 : index
    %c0_42 = arith.constant 0 : index
    %142 = vector.load %arg4[%c8, %c0_42] : memref<16x16xf32, #tpu.memory_space<vmem>>, vector<1x16xf32>
    %143 = vector.extract_strided_slice %137 {offsets = [0, 0], sizes = [1, 16], strides = [1, 1]} : vector<2x16xf32> to vector<1x16xf32>
    %144 = arith.subf %142, %143 : vector<1x16xf32>
    %145 = math.absf %144 : vector<1x16xf32>
    %cst_43 = arith.constant 0.000000e+00 : f32
    %146 = vector.broadcast %cst_43 : f32 to vector<1x16xf32>
    %147 = arith.select %141, %145, %146 : vector<1x16xi1>, vector<1x16xf32>
    %148 = vector.shape_cast %147 : vector<1x16xf32> to vector<1x1x16xf32>
    %cst_44 = arith.constant dense<0.000000e+00> : vector<1xf32>
    %149 = vector.multi_reduction <add>, %148, %cst_44 [1, 2] : vector<1x1x16xf32> to vector<1xf32>
    %150 = vector.shape_cast %149 : vector<1xf32> to vector<1x1x1xf32>
    %151 = vector.extract %150[0, 0, 0] : f32 from vector<1x1x1xf32>
    %152 = vector.extract_strided_slice %137 {offsets = [0, 8], sizes = [2, 8], strides = [1, 1]} : vector<2x16xf32> to vector<2x8xf32>
    %153 = vector.extract_strided_slice %137 {offsets = [0, 0], sizes = [2, 8], strides = [1, 1]} : vector<2x16xf32> to vector<2x8xf32>
    %154 = arith.subf %152, %153 : vector<2x8xf32>
    %155 = math.absf %154 : vector<2x8xf32>
    %156 = vector.extract_strided_slice %49 {offsets = [0, 0], sizes = [1, 8], strides = [1, 1]} : vector<1x16xi32> to vector<1x8xi32>
    %c7_i32_45 = arith.constant 7 : i32
    %157 = vector.broadcast %c7_i32_45 : i32 to vector<1x8xi32>
    %158 = arith.andi %156, %157 : vector<1x8xi32>
    %c0_i32_46 = arith.constant 0 : i32
    %159 = vector.broadcast %c0_i32_46 : i32 to vector<1x8xi32>
    %160 = arith.cmpi eq, %158, %159 : vector<1x8xi32>
    %cst_47 = arith.constant 0.000000e+00 : f32
    %161 = vector.shape_cast %160 : vector<1x8xi1> to vector<1x8xi1>
    %162 = vector.broadcast %161 : vector<1x8xi1> to vector<2x8xi1>
    %163 = vector.broadcast %cst_47 : f32 to vector<2x8xf32>
    %164 = arith.select %162, %155, %163 : vector<2x8xi1>, vector<2x8xf32>
    %165 = vector.shape_cast %164 : vector<2x8xf32> to vector<1x2x8xf32>
    %cst_48 = arith.constant dense<0.000000e+00> : vector<1xf32>
    %166 = vector.multi_reduction <add>, %165, %cst_48 [1, 2] : vector<1x2x8xf32> to vector<1xf32>
    %167 = vector.shape_cast %166 : vector<1xf32> to vector<1x1x1xf32>
    %168 = vector.extract %167[0, 0, 0] : f32 from vector<1x1x1xf32>
    %169 = arith.addf %168, %151 : f32
    %170 = tpu.iota {dimensions = array<i32: 1>} : vector<1x128xi32>
    %cst_49 = arith.constant 0.000000e+00 : f32
    %171 = vector.broadcast %cst_49 : f32 to vector<1x128xf32>
    %c0_i32_50 = arith.constant 0 : i32
    %172 = vector.broadcast %c0_i32_50 : i32 to vector<1x128xi32>
    %173 = arith.cmpi eq, %170, %172 : vector<1x128xi32>
    %cst_51 = arith.constant 0.000000e+00 : f32
    %174 = vector.broadcast %47 : f32 to vector<1x128xf32>
    %175 = vector.broadcast %cst_51 : f32 to vector<1x128xf32>
    %176 = arith.select %173, %174, %175 : vector<1x128xi1>, vector<1x128xf32>
    %177 = arith.addf %171, %176 : vector<1x128xf32>
    %c1_i32_52 = arith.constant 1 : i32
    %178 = vector.broadcast %c1_i32_52 : i32 to vector<1x128xi32>
    %179 = arith.cmpi eq, %170, %178 : vector<1x128xi32>
    %cst_53 = arith.constant 2.560000e+02 : f32
    %cst_54 = arith.constant 0.000000e+00 : f32
    %180 = vector.broadcast %cst_53 : f32 to vector<1x128xf32>
    %181 = vector.broadcast %cst_54 : f32 to vector<1x128xf32>
    %182 = arith.select %179, %180, %181 : vector<1x128xi1>, vector<1x128xf32>
    %183 = arith.addf %177, %182 : vector<1x128xf32>
    %c2_i32 = arith.constant 2 : i32
    %184 = vector.broadcast %c2_i32 : i32 to vector<1x128xi32>
    %185 = arith.cmpi eq, %170, %184 : vector<1x128xi32>
    %cst_55 = arith.constant 0.000000e+00 : f32
    %186 = vector.broadcast %66 : f32 to vector<1x128xf32>
    %187 = vector.broadcast %cst_55 : f32 to vector<1x128xf32>
    %188 = arith.select %185, %186, %187 : vector<1x128xi1>, vector<1x128xf32>
    %189 = arith.addf %183, %188 : vector<1x128xf32>
    %c3_i32_56 = arith.constant 3 : i32
    %190 = vector.broadcast %c3_i32_56 : i32 to vector<1x128xi32>
    %191 = arith.cmpi eq, %170, %190 : vector<1x128xi32>
    %cst_57 = arith.constant 2.560000e+02 : f32
    %cst_58 = arith.constant 0.000000e+00 : f32
    %192 = vector.broadcast %cst_57 : f32 to vector<1x128xf32>
    %193 = vector.broadcast %cst_58 : f32 to vector<1x128xf32>
    %194 = arith.select %191, %192, %193 : vector<1x128xi1>, vector<1x128xf32>
    %195 = arith.addf %189, %194 : vector<1x128xf32>
    %c4_i32 = arith.constant 4 : i32
    %196 = vector.broadcast %c4_i32 : i32 to vector<1x128xi32>
    %197 = arith.cmpi eq, %170, %196 : vector<1x128xi32>
    %cst_59 = arith.constant 0.000000e+00 : f32
    %198 = vector.broadcast %101 : f32 to vector<1x128xf32>
    %199 = vector.broadcast %cst_59 : f32 to vector<1x128xf32>
    %200 = arith.select %197, %198, %199 : vector<1x128xi1>, vector<1x128xf32>
    %201 = arith.addf %195, %200 : vector<1x128xf32>
    %c5_i32 = arith.constant 5 : i32
    %202 = vector.broadcast %c5_i32 : i32 to vector<1x128xi32>
    %203 = arith.cmpi eq, %170, %202 : vector<1x128xi32>
    %cst_60 = arith.constant 6.400000e+01 : f32
    %cst_61 = arith.constant 0.000000e+00 : f32
    %204 = vector.broadcast %cst_60 : f32 to vector<1x128xf32>
    %205 = vector.broadcast %cst_61 : f32 to vector<1x128xf32>
    %206 = arith.select %203, %204, %205 : vector<1x128xi1>, vector<1x128xf32>
    %207 = arith.addf %201, %206 : vector<1x128xf32>
    %c6_i32 = arith.constant 6 : i32
    %208 = vector.broadcast %c6_i32 : i32 to vector<1x128xi32>
    %209 = arith.cmpi eq, %170, %208 : vector<1x128xi32>
    %cst_62 = arith.constant 0.000000e+00 : f32
    %210 = vector.broadcast %136 : f32 to vector<1x128xf32>
    %211 = vector.broadcast %cst_62 : f32 to vector<1x128xf32>
    %212 = arith.select %209, %210, %211 : vector<1x128xi1>, vector<1x128xf32>
    %213 = arith.addf %207, %212 : vector<1x128xf32>
    %c7_i32_63 = arith.constant 7 : i32
    %214 = vector.broadcast %c7_i32_63 : i32 to vector<1x128xi32>
    %215 = arith.cmpi eq, %170, %214 : vector<1x128xi32>
    %cst_64 = arith.constant 1.600000e+01 : f32
    %cst_65 = arith.constant 0.000000e+00 : f32
    %216 = vector.broadcast %cst_64 : f32 to vector<1x128xf32>
    %217 = vector.broadcast %cst_65 : f32 to vector<1x128xf32>
    %218 = arith.select %215, %216, %217 : vector<1x128xi1>, vector<1x128xf32>
    %219 = arith.addf %213, %218 : vector<1x128xf32>
    %c8_i32 = arith.constant 8 : i32
    %220 = vector.broadcast %c8_i32 : i32 to vector<1x128xi32>
    %221 = arith.cmpi eq, %170, %220 : vector<1x128xi32>
    %cst_66 = arith.constant 0.000000e+00 : f32
    %222 = vector.broadcast %169 : f32 to vector<1x128xf32>
    %223 = vector.broadcast %cst_66 : f32 to vector<1x128xf32>
    %224 = arith.select %221, %222, %223 : vector<1x128xi1>, vector<1x128xf32>
    %225 = arith.addf %219, %224 : vector<1x128xf32>
    %c9_i32 = arith.constant 9 : i32
    %226 = vector.broadcast %c9_i32 : i32 to vector<1x128xi32>
    %227 = arith.cmpi eq, %170, %226 : vector<1x128xi32>
    %cst_67 = arith.constant 4.000000e+00 : f32
    %cst_68 = arith.constant 0.000000e+00 : f32
    %228 = vector.broadcast %cst_67 : f32 to vector<1x128xf32>
    %229 = vector.broadcast %cst_68 : f32 to vector<1x128xf32>
    %230 = arith.select %227, %228, %229 : vector<1x128xi1>, vector<1x128xf32>
    %231 = arith.addf %225, %230 : vector<1x128xf32>
    %c0_69 = arith.constant 0 : index
    %c0_70 = arith.constant 0 : index
    %c0_71 = arith.constant 0 : index
    %232 = vector.load %arg3[%c0_69, %c0_70, %c0_71] : memref<1x1x128xf32, #tpu.memory_space<vmem>>, vector<1x1x128xf32>
    %233 = vector.shape_cast %232 : vector<1x1x128xf32> to vector<1x128xf32>
    %234 = vector.shape_cast %231 : vector<1x128xf32> to vector<1x1x128xf32>
    tpu.vector_store %arg3[%c0_69, %c0_70, %c0_71], %234 {strides = array<i32>} : memref<1x1x128xf32, #tpu.memory_space<vmem>>, vector<1x1x128xf32>,
    return
  }
  func.func @transform_0(%arg0: i32) -> (i32, i32, i32) {
    %c0_i32 = arith.constant 0 : i32
    %c0_i32_0 = arith.constant 0 : i32
    %c0_i32_1 = arith.constant 0 : i32
    return %arg0, %c0_i32, %c0_i32_0 : i32, i32, i32
  }
  func.func @transform_1(%arg0: i32) -> (i32, i32, i32) {
    %c0_i32 = arith.constant 0 : i32
    %c0_i32_0 = arith.constant 0 : i32
    %c0_i32_1 = arith.constant 0 : i32
    return %arg0, %c0_i32, %c0_i32_0 : i32, i32, i32
  }
  func.func @transform_2(%arg0: i32) -> (i32, i32, i32) {
    %c0_i32 = arith.constant 0 : i32
    %c0_i32_0 = arith.constant 0 : i32
    %c0_i32_1 = arith.constant 0 : i32
    return %arg0, %c0_i32, %c0_i32_0 : i32, i32, i32
  }
}

</mosaic_0001>

<llo_original>
// kernel: scale_and_shift_invariant_loss.1
$region0: #{scale_and_shift_invariant_loss.1}
  #allocation0 [shape = 'u32[]', space=smem, size = 0x4, offset = 0x4, fixed_abs, tag = 'smem constant byte address 0x4 - core index']
  #allocation1 [shape = 'u32[144,128]{1,0:T(1,128)}', space=vmem, size = 0x12000, scoped, tag = 'internal scratch']
  #allocation2 [shape = 'f32[16,16]{1,0:T(8,128)}', space=vmem, size = 0x2000, scoped, tag = 'scratch operand']
  %s0 = inlined_call_operand.hbm [shape: f32[2,16,16], index: 0, kind: input, shape index: {}]
  %s1 = inlined_call_operand.hbm [shape: f32[2,16,16], index: 1, kind: input, shape index: {}]
  %s2 = inlined_call_operand.vmem [shape: f32[2,1,128], index: 2, kind: output, shape index: {}]
  %s3 = sld [smem:[#allocation0]]
  $region49: #{scale_and_shift_invariant_loss.1} parent=0
    _
  %s5 = ssub.s32 1, %s3
  %s6 = scalar_select 0, %s5, %s3
  $region1: #{scale_and_shift_invariant_loss.1} parent=0
    #allocation3 [shape = 'u8[16384]{0}', space=vmem, size = 0x4000, scoped, tag = 'input window, operand 0']
    #allocation4 [shape = 's32[2]{0}', space=sflag, size = 0x8, scoped, tag = 'scoped memory for scale_and_shift_invariant_loss.1']
    #allocation5 [shape = 'u8[16384]{0}', space=vmem, size = 0x4000, scoped, tag = 'input window, operand 1']
    #allocation6 [shape = 's32[2]{0}', space=sflag, size = 0x8, scoped, tag = 'scoped memory for scale_and_shift_invariant_loss.1']
    %7 = vsyncpa [#allocation4], 0
    %s8 = scalar_lea.sflag [#allocation4], 1
    %9 = vsyncpa %s8, 0
    %10 = vsyncpa [#allocation6], 0
    %s11 = scalar_lea.sflag [#allocation6], 1
    %12 = vsyncpa %s11, 0
    loop: start=0, step=1, limit=4
    $region2: #{scale_and_shift_invariant_loss.1} parent=1 // loop_pre_header
      _
    $region3: #{scale_and_shift_invariant_loss.1} parent=1 // loop_header
      %s14 = sphi 0, %s18
      %p15 = scmp.ge.s32.totalorder %s14, 4
      %s24 = sphi 0, %s26
      %s27 = sphi 0, %s24
      %s28 = sphi 0, %s27
      %s44 = sphi 0, %s28
      %s50 = sphi 0, %s52
      %s53 = sphi 0, %s50
      %s54 = sphi 0, %s53
      %s70 = sphi 0, %s54
      %s76 = sphi 0, %s78
      %s79 = sphi 0, %s76
      %s80 = sphi 0, %s79
      %s96 = sphi 0, %s80
    $region4: #{scale_and_shift_invariant_loss.1} parent=1 // loop_header_branch
      %17 = sbr.rel (%p15) target = $region8
    $region5: #{scale_and_shift_invariant_loss.1} parent=1 // loop_body
      %s19 = ssub.s32 %s14, 1
      %s20 = ssub.s32 %s14, 2
      %s21 = sadd.s32 %s14, 1
      %s22 = ssub.s32 %s14, %s21
      %p23 = scmp.eq.s32.totalorder %s22, 0
      %s25 = sadd.s32 %s24, 1
      %s26 = scalar_select %p23, %s24, %s25
      %p29 = pneg %p23
      %p30 = scmp.eq.s32.totalorder %s14, 1
      %p31 = por %p29, %p30
      %p32 = scmp.ne.s32.totalorder %s24, %s27
      %p33 = scmp.eq.s32.totalorder %s14, 0
      %p34 = por %p32, %p33
      %p35 = scmp.ne.s32.totalorder %s24, %s27
      %p36 = scmp.eq.s32.totalorder %s19, 1
      %p37 = por %p35, %p36
      %p38 = scmp.ne.s32.totalorder %s27, %s28
      %p39 = scmp.eq.s32.totalorder %s19, 0
      %p40 = por %p38, %p39
      %p41 = scmp.ne.s32.totalorder %s27, %s28
      %p42 = scmp.eq.s32.totalorder %s20, 1
      %p43 = por %p41, %p42
      %p45 = scmp.ne.s32.totalorder %s28, %s44
      %p46 = scmp.eq.s32.totalorder %s20, 0
      %p47 = por %p45, %p46
      %s48 = ssub.s32 %s14, %s21
      %p49 = scmp.eq.s32.totalorder %s48, 0
      %s51 = sadd.s32 %s50, 1
      %s52 = scalar_select %p49, %s50, %s51
      %p55 = pneg %p49
      %p56 = scmp.eq.s32.totalorder %s14, 1
      %p57 = por %p55, %p56
      %p58 = scmp.ne.s32.totalorder %s50, %s53
      %p59 = scmp.eq.s32.totalorder %s14, 0
      %p60 = por %p58, %p59
      %p61 = scmp.ne.s32.totalorder %s50, %s53
      %p62 = scmp.eq.s32.totalorder %s19, 1
      %p63 = por %p61, %p62
      %p64 = scmp.ne.s32.totalorder %s53, %s54
      %p65 = scmp.eq.s32.totalorder %s19, 0
      %p66 = por %p64, %p65
      %p67 = scmp.ne.s32.totalorder %s53, %s54
      %p68 = scmp.eq.s32.totalorder %s20, 1
      %p69 = por %p67, %p68
      %p71 = scmp.ne.s32.totalorder %s54, %s70
      %p72 = scmp.eq.s32.totalorder %s20, 0
      %p73 = por %p71, %p72
      %s74 = ssub.s32 %s14, %s21
      %p75 = scmp.eq.s32.totalorder %s74, 0
      %s77 = sadd.s32 %s76, 1
      %s78 = scalar_select %p75, %s76, %s77
      %p81 = pneg %p75
      %p82 = scmp.eq.s32.totalorder %s14, 1
      %p83 = por %p81, %p82
      %p84 = scmp.ne.s32.totalorder %s76, %s79
      %p85 = scmp.eq.s32.totalorder %s14, 0
      %p86 = por %p84, %p85
      %p87 = scmp.ne.s32.totalorder %s76, %s79
      %p88 = scmp.eq.s32.totalorder %s19, 1
      %p89 = por %p87, %p88
      %p90 = scmp.ne.s32.totalorder %s79, %s80
      %p91 = scmp.eq.s32.totalorder %s19, 0
      %p92 = por %p90, %p91
      %p93 = scmp.ne.s32.totalorder %s79, %s80
      %p94 = scmp.eq.s32.totalorder %s20, 1
      %p95 = por %p93, %p94
      %p97 = scmp.ne.s32.totalorder %s80, %s96
      %p98 = scmp.eq.s32.totalorder %s20, 0
      %p99 = por %p97, %p98
      %p100 = scmp.le.s32.totalorder 1, %s14
      %p101 = scmp.lt.s32.totalorder %s14, 3
      %p102 = pnand %p100, %p101
      %p103 = pneg %p102
      // Predicated region
      $region9: #{scale_and_shift_invariant_loss.1} parent=5 // pred_check
        _
      $region10: #{scale_and_shift_invariant_loss.1} parent=5 // pred_check_branch
        %105 = sbr.rel (%p102) target = $region12
      $region11: #{scale_and_shift_invariant_loss.1} parent=5 // pred_region
        %s106 = ssub.s32 %s14, 1
      $region12: #{scale_and_shift_invariant_loss.1} parent=5 // pred_fallthru
        _
      %p107 = scmp.lt.s32.totalorder %s14, 2
      // Predicated region
      $region13: #{scale_and_shift_invariant_loss.1} parent=5 // pred_check
        %p108 = pneg %p107
      $region14: #{scale_and_shift_invariant_loss.1} parent=5 // pred_check_branch
        %110 = sbr.rel (%p108) target = $region16
      $region15: #{scale_and_shift_invariant_loss.1} parent=5 // pred_region
        // Predicated region
        $region17: #{scale_and_shift_invariant_loss.1} parent=15 // pred_check
          %p111 = pneg %p34
        $region18: #{scale_and_shift_invariant_loss.1} parent=15 // pred_check_branch
          %113 = sbr.rel (%p111) target = $region20
        $region19: #{scale_and_shift_invariant_loss.1} parent=15 // pred_region
          %s114 = sand.u32 %s24, 1
          %s115 = scalar_lea.sflag [#allocation4], %s114
          %s116 = sand.u32 %s24, 1
          %s117 = smul.addr %s116, 16
          %s118 = scalar_lea.vmem [#allocation3], %s117
          %s120 = ssub.s32 256, 256
          %121 = vsyncadd %s115, %s120
          %s122 = smul.addr %s14, 2
          %s123 = smul.addr %s122, 128
          %s124 = scalar_lea.hbm %s0, %s123
          %s125 = sshll.u32 %s118, 4
          %s126 = int_to_ptr.vmem [resolvable:$true] %s125
          %131 = dma.hbm_to_vmem [thread:$0]  %s124, 256, %s126, %s115, 128, 128, 8
        $region20: #{scale_and_shift_invariant_loss.1} parent=15 // pred_fallthru
          _
        // Predicated region
        $region21: #{scale_and_shift_invariant_loss.1} parent=15 // pred_check
          %p132 = pneg %p60
        $region22: #{scale_and_shift_invariant_loss.1} parent=15 // pred_check_branch
          %134 = sbr.rel (%p132) target = $region24
        $region23: #{scale_and_shift_invariant_loss.1} parent=15 // pred_region
          %s135 = sand.u32 %s50, 1
          %s136 = scalar_lea.sflag [#allocation6], %s135
          %s137 = sand.u32 %s50, 1
          %s138 = smul.addr %s137, 16
          %s139 = scalar_lea.vmem [#allocation5], %s138
          %s141 = ssub.s32 256, 256
          %142 = vsyncadd %s136, %s141
          %s143 = smul.addr %s14, 2
          %s144 = smul.addr %s143, 128
          %s145 = scalar_lea.hbm %s1, %s144
          %s146 = sshll.u32 %s139, 4
          %s147 = int_to_ptr.vmem [resolvable:$true] %s146
          %152 = dma.hbm_to_vmem [thread:$0]  %s145, 256, %s147, %s136, 128, 128, 8
        $region24: #{scale_and_shift_invariant_loss.1} parent=15 // pred_fallthru
          _
      $region16: #{scale_and_shift_invariant_loss.1} parent=5 // pred_fallthru
        _
      %p153 = scmp.le.s32.totalorder 1, %s14
      %p154 = scmp.lt.s32.totalorder %s14, 3
      %p155 = pnand %p153, %p154
      %p156 = pneg %p155
      // Predicated region
      $region25: #{scale_and_shift_invariant_loss.1} parent=5 // pred_check
        _
      $region26: #{scale_and_shift_invariant_loss.1} parent=5 // pred_check_branch
        %158 = sbr.rel (%p155) target = $region28
      $region27: #{scale_and_shift_invariant_loss.1} parent=5 // pred_region
        %s159 = ssub.s32 %s14, 1
        %s160 = sand.u32 %s27, 1
        %s161 = scalar_lea.sflag [#allocation4], %s160
        %s162 = sand.u32 %s27, 1
        %s163 = smul.addr %s162, 16
        %s164 = scalar_lea.vmem [#allocation3], %s163
        // Predicated region
        $region29: #{scale_and_shift_invariant_loss.1} parent=27 // pred_check
          %p165 = pneg %p40
        $region30: #{scale_and_shift_invariant_loss.1} parent=27 // pred_check_branch
          %167 = sbr.rel (%p165) target = $region32
        $region31: #{scale_and_shift_invariant_loss.1} parent=27 // pred_region
          %168 = dma.done %s161, 256
        $region32: #{scale_and_shift_invariant_loss.1} parent=27 // pred_fallthru
          _
        %s169 = sand.u32 %s53, 1
        %s170 = scalar_lea.sflag [#allocation6], %s169
        %s171 = sand.u32 %s53, 1
        %s172 = smul.addr %s171, 16
        %s173 = scalar_lea.vmem [#allocation5], %s172
        // Predicated region
        $region33: #{scale_and_shift_invariant_loss.1} parent=27 // pred_check
          %p174 = pneg %p66
        $region34: #{scale_and_shift_invariant_loss.1} parent=27 // pred_check_branch
          %176 = sbr.rel (%p174) target = $region36
        $region35: #{scale_and_shift_invariant_loss.1} parent=27 // pred_region
          %177 = dma.done %s170, 256
        $region36: #{scale_and_shift_invariant_loss.1} parent=27 // pred_fallthru
          _
        %s178 = sand.u32 %s27, 1
        %s179 = scalar_lea.sflag [#allocation4], %s178
        %s180 = sand.u32 %s27, 1
        %s181 = smul.addr %s180, 16
        %s182 = scalar_lea.vmem [#allocation3], %s181
        %p183 = pneg %p40
        %p184 = pneg %p37
        %s185 = sand.u32 %s53, 1
        %s186 = scalar_lea.sflag [#allocation6], %s185
        %s187 = sand.u32 %s53, 1
        %s188 = smul.addr %s187, 16
        %s189 = scalar_lea.vmem [#allocation5], %s188
        %p190 = pneg %p66
        %p191 = pneg %p63
        %p192 = pneg %p92
        %p193 = pneg %p89
        %p194 = scmp.lt.s32.totalorder %s19, 1
        %s195 = scalar_select %p194, %s19, 1
        %s196 = scalar_lea.vmem %s2, %s195
        %p197 = scmp.lt.s32.totalorder %s19, 1
        %s198 = scalar_select %p197, %s19, 1
        %s199 = scalar_lea.vmem %s2, %s198
        %v200 = vld [vmem:[%s164] sm:$0xff]
        %v201 = vld [vmem:[%s164 + $0x8] sm:$0xff]
        %v202 = vld [vmem:[%s173] sm:$0xff]
        %v203 = vld [vmem:[%s173 + $0x8] sm:$0xff]
        %v204 = vmul.f32 %v200, %v200
        %v205 = vmul.f32 %v201, %v201
        %vm206 = vcmask 130048
        %v207 = vsel %vm206, %v204, 0.0
        %v208 = vsel %vm206, %v205, 0.0
        %v209 = vadd.f32 %v207, %v208
        %210 = vadd.xlane.f32.xlu0 %v209
        %v211 = vpop.xlane.xlu0 %210
        %v212 = vrot.slane %v211, 4
        %v213 = vadd.f32 %v211, %v212
        %v214 = vrot.slane %v213, 2
        %v215 = vadd.f32 %v213, %v214
        %v216 = vrot.slane %v215, 1
        %v217 = vadd.f32 %v215, %v216
        %s218 = vtos %v217
        %v219 = vsel %vm206, %v200, 0.0
        %v220 = vsel %vm206, %v201, 0.0
        %v221 = vadd.f32 %v219, %v220
        %222 = vadd.xlane.f32.xlu0 %v221
        %v223 = vpop.xlane.xlu0 %222
        %v224 = vrot.slane %v223, 4
        %v225 = vadd.f32 %v223, %v224
        %v226 = vrot.slane %v225, 2
        %v227 = vadd.f32 %v225, %v226
        %v228 = vrot.slane %v227, 1
        %v229 = vadd.f32 %v227, %v228
        %s230 = vtos %v229
        %v231 = vmul.f32 %v200, %v202
        %v232 = vmul.f32 %v201, %v203
        %v233 = vsel %vm206, %v231, 0.0
        %v234 = vsel %vm206, %v232, 0.0
        %v235 = vadd.f32 %v233, %v234
        %236 = vadd.xlane.f32.xlu0 %v235
        %v237 = vpop.xlane.xlu0 %236
        %v238 = vrot.slane %v237, 4
        %v239 = vadd.f32 %v237, %v238
        %v240 = vrot.slane %v239, 2
        %v241 = vadd.f32 %v239, %v240
        %v242 = vrot.slane %v241, 1
        %v243 = vadd.f32 %v241, %v242
        %s244 = vtos %v243
        %v245 = vsel %vm206, %v202, 0.0
        %v246 = vsel %vm206, %v203, 0.0
        %v247 = vadd.f32 %v245, %v246
        %248 = vadd.xlane.f32.xlu0 %v247
        %v249 = vpop.xlane.xlu0 %248
        %v250 = vrot.slane %v249, 4
        %v251 = vadd.f32 %v249, %v250
        %v252 = vrot.slane %v251, 2
        %v253 = vadd.f32 %v251, %v252
        %v254 = vrot.slane %v253, 1
        %v255 = vadd.f32 %v253, %v254
        %s256 = vtos %v255
        %s257 = smul.f32 %s218, 256.0
        %s258 = smul.f32 %s230, %s230
        %s259 = ssub.f32 %s257, %s258
        %p260 = scmp.ne.f32.partialorder %s259, 0.0
        %s261 = scalar_select %p260, %s259, 1.0
        %s262 = smul.f32 %s244, 256.0
        %s263 = smul.f32 %s230, %s256
        %s264 = ssub.f32 %s262, %s263
        %v265 = vstv %s261
        %v266 = vrcp.pop %v265
        %s267 = vtos %v266
        %s268 = smul.f32 %s264, %s267
        %s269 = scalar_select %p260, %s268, 0.0
        %s270 = ssub.f32 0.0, %s230
        %s271 = smul.f32 %s270, %s244
        %s272 = smul.f32 %s218, %s256
        %s273 = sadd.f32 %s271, %s272
        %v274 = vstv %s261
        %v275 = vrcp.pop %v274
        %s276 = vtos %v275
        %s277 = smul.f32 %s273, %s276
        %s278 = scalar_select %p260, %s277, 0.0
        %v279 = vstv %s269
        %v280 = vmul.f32 %v279, %v200
        %v281 = vmul.f32 %v279, %v201
        %v282 = vstv %s278
        %v283 = vadd.f32 %v280, %v282
        %v284 = vadd.f32 %v281, %v282
        %v285 = vsub.f32 %v283, %v202
        %v286 = vsub.f32 %v284, %v203
        %v287 = vmul.f32 %v285, %v285
        %v288 = vmul.f32 %v286, %v286
        %v289 = vsel %vm206, %v287, 0.0
        %v290 = vsel %vm206, %v288, 0.0
        %v291 = vadd.f32 %v289, %v290
        %292 = vadd.xlane.f32.xlu0 %v291
        %v293 = vpop.xlane.xlu0 %292
        %v294 = vrot.slane %v293, 4
        %v295 = vadd.f32 %v293, %v294
        %v296 = vrot.slane %v295, 2
        %v297 = vadd.f32 %v295, %v296
        %v298 = vrot.slane %v297, 1
        %v299 = vadd.f32 %v297, %v298
        %s300 = vtos %v299
        %301 = vst.msk [vmem:[#allocation2] sm:$0xff] %vm206, %v285
        %302 = vst.msk [vmem:[#allocation2 + $0x8] sm:$0xff] %vm206, %v286
        %v303 = vlaneseq
        %v304 = vand.u32 %v303, 127
        %vm307 = vcmask 1040384
        %v308 = vrot.slane %v285, 7
        %v309 = vrot.slane %v286, 7
        %v310 = vsel %vm307, %v308, %v309
        %v313 = vsub.f32 %v285, %v308
        %v314 = vsub.f32 %v286, %v310
        %v315 = vand.u32 2147483647, %v313
        %v316 = vand.u32 2147483647, %v314
        %vm319 = vcmask 1046528
        %v320 = vrot.slane %v315, 1
        %v321 = vrot.slane %v316, 1
        %v322 = vsel %vm319, %v320, %v321
        %v325 = vsel %vm206, %v322, 0.0
        %vm326 = vcmask 129024
        %v327 = vsel %vm326, %v321, 0.0
        %v328 = vadd.f32 %v325, %v327
        %329 = vadd.xlane.f32.xlu0 %v328
        %v330 = vpop.xlane.xlu0 %329
        %v331 = vrot.slane %v330, 4
        %v332 = vadd.f32 %v330, %v331
        %v333 = vrot.slane %v332, 2
        %v334 = vadd.f32 %v332, %v333
        %v335 = vrot.slane %v334, 1
        %v336 = vadd.f32 %v334, %v335
        %s337 = vtos %v336
        %338 = vrot.lane.b32.xlu0 %v285, 1
        %v339 = vpop.permute.xlu0 %338
        %340 = vrot.lane.b32.xlu0 %v286, 1
        %v341 = vpop.permute.xlu0 %340
        %v344 = vsub.f32 %v285, %v339
        %v345 = vsub.f32 %v286, %v341
        %v346 = vand.u32 2147483647, %v344
        %v347 = vand.u32 2147483647, %v345
        %350 = vrot.lane.b32.xlu0 %v346, 127
        %v351 = vpop.permute.xlu0 %350
        %352 = vrot.lane.b32.xlu0 %v347, 127
        %v353 = vpop.permute.xlu0 %352
        %vm356 = vcmask 121856
        %v357 = vsel %vm356, %v351, 0.0
        %v358 = vsel %vm356, %v353, 0.0
        %v359 = vadd.f32 %v357, %v358
        %360 = vadd.xlane.f32.xlu0 %v359
        %v361 = vpop.xlane.xlu0 %360
        %v362 = vrot.slane %v361, 4
        %v363 = vadd.f32 %v361, %v362
        %v364 = vrot.slane %v363, 2
        %v365 = vadd.f32 %v363, %v364
        %v366 = vrot.slane %v365, 1
        %v367 = vadd.f32 %v365, %v366
        %s368 = vtos %v367
        %s369 = sadd.f32 %s368, %s337
        %v370 = vld [vmem:[#allocation2] ss:$2 sm:$0xff]
        %v371 = vand.u32 %v304, 1
        %vm372 = vcmp.eq.s32.totalorder %v371, 0
        %s373 = scalar_lea.vmem [#allocation2], 2
        %v374 = vld [vmem:[%s373] ss:$2 sm:$0x7f]
        %v375 = vsub.f32 %v374, %v370
        %v376 = vand.u32 2147483647, %v375
        %v377 = vsel %vm372, 1, 0
        %vm378 = vcmp.eq.s32.totalorder %v377, 1
        %v379 = vsel %vm378, %v376, 0.0
        %v380 = vsel %vm326, %v379, 0.0
        %381 = vadd.xlane.f32.xlu0 %v380
        %v382 = vpop.xlane.xlu0 %381
        %v383 = vrot.slane %v382, 4
        %v384 = vadd.f32 %v382, %v383
        %v385 = vrot.slane %v384, 2
        %v386 = vadd.f32 %v384, %v385
        %v387 = vrot.slane %v386, 1
        %v388 = vadd.f32 %v386, %v387
        %s389 = vtos %v388
        %391 = vrot.lane.b32.xlu0 %v370, 2
        %v392 = vpop.permute.xlu0 %391
        %v394 = vsub.f32 %v370, %v392
        %v395 = vand.u32 2147483647, %v394
        %397 = vrot.lane.b32.xlu0 %v395, 126
        %v398 = vpop.permute.xlu0 %397
        %v400 = vsel %vm378, %v398, 0.0
        %vm401 = vcmask 113664
        %v402 = vsel %vm401, %v400, 0.0
        %403 = vadd.xlane.f32.xlu0 %v402
        %v404 = vpop.xlane.xlu0 %403
        %v405 = vrot.slane %v404, 4
        %v406 = vadd.f32 %v404, %v405
        %v407 = vrot.slane %v406, 2
        %v408 = vadd.f32 %v406, %v407
        %v409 = vrot.slane %v408, 1
        %v410 = vadd.f32 %v408, %v409
        %s411 = vtos %v410
        %s412 = sadd.f32 %s411, %s389
        %v413 = vld [vmem:[#allocation2] ss:$4 sm:$0xf]
        %v414 = vand.u32 %v304, 3
        %vm415 = vcmp.eq.s32.totalorder %v414, 0
        %s416 = scalar_lea.vmem [#allocation2], 4
        %v417 = vld [vmem:[%s416] ss:$4 sm:$0x7]
        %v418 = vsub.f32 %v417, %v413
        %v419 = vand.u32 2147483647, %v418
        %v420 = vsel %vm415, 1, 0
        %vm421 = vcmp.eq.s32.totalorder %v420, 1
        %v422 = vsel %vm421, %v419, 0.0
        %vm423 = vcmask 124928
        %v424 = vsel %vm423, %v422, 0.0
        %425 = vadd.xlane.f32.xlu0 %v424
        %v426 = vpop.xlane.xlu0 %425
        %v427 = vrot.slane %v426, 4
        %v428 = vadd.f32 %v426, %v427
        %v429 = vrot.slane %v428, 2
        %v430 = vadd.f32 %v428, %v429
        %v431 = vrot.slane %v430, 1
        %v432 = vadd.f32 %v430, %v431
        %s433 = vtos %v432
        %435 = vrot.lane.b32.xlu0 %v413, 4
        %v436 = vpop.permute.xlu0 %435
        %v438 = vsub.f32 %v413, %v436
        %v439 = vand.u32 2147483647, %v438
        %441 = vrot.lane.b32.xlu0 %v439, 124
        %v442 = vpop.permute.xlu0 %441
        %v444 = vsel %vm421, %v442, 0.0
        %vm445 = vcmask 93184
        %v446 = vsel %vm445, %v444, 0.0
        %447 = vadd.xlane.f32.xlu0 %v446
        %v448 = vpop.xlane.xlu0 %447
        %v449 = vrot.slane %v448, 4
        %v450 = vadd.f32 %v448, %v449
        %v451 = vrot.slane %v450, 2
        %v452 = vadd.f32 %v450, %v451
        %v453 = vrot.slane %v452, 1
        %v454 = vadd.f32 %v452, %v453
        %s455 = vtos %v454
        %s456 = sadd.f32 %s455, %s433
        %v457 = vld [vmem:[#allocation2] ss:$8 sm:$0x3]
        %v458 = vand.u32 %v304, 7
        %vm459 = vcmp.eq.s32.totalorder %v458, 0
        %v460 = vld [vmem:[#allocation2 + $0x8] sm:$0x1]
        %v461 = vsub.f32 %v460, %v457
        %v462 = vand.u32 2147483647, %v461
        %v463 = vsel %vm459, %v462, 0.0
        %vm464 = vcmask 122880
        %v465 = vsel %vm464, %v463, 0.0
        %466 = vadd.xlane.f32.xlu0 %v465
        %v467 = vpop.xlane.xlu0 %466
        %v468 = vrot.slane %v467, 4
        %v469 = vadd.f32 %v467, %v468
        %v470 = vrot.slane %v469, 2
        %v471 = vadd.f32 %v469, %v470
        %v472 = vrot.slane %v471, 1
        %v473 = vadd.f32 %v471, %v472
        %s474 = vtos %v473
        %476 = vrot.lane.b32.xlu0 %v457, 8
        %v477 = vpop.permute.xlu0 %476
        %v479 = vsub.f32 %v457, %v477
        %v480 = vand.u32 2147483647, %v479
        %v481 = vsel %vm459, 1, 0
        %vm482 = vcmp.eq.s32.totalorder %v481, 1
        %484 = vrot.lane.b32.xlu0 %v480, 120
        %v485 = vpop.permute.xlu0 %484
        %v487 = vsel %vm482, %v485, 0.0
        %vm488 = vcmask 58368
        %v489 = vsel %vm488, %v487, 0.0
        %490 = vadd.xlane.f32.xlu0 %v489
        %v491 = vpop.xlane.xlu0 %490
        %v492 = vrot.slane %v491, 4
        %v493 = vadd.f32 %v491, %v492
        %v494 = vrot.slane %v493, 2
        %v495 = vadd.f32 %v493, %v494
        %v496 = vrot.slane %v495, 1
        %v497 = vadd.f32 %v495, %v496
        %s498 = vtos %v497
        %s499 = sadd.f32 %s498, %s474
        %vm500 = vcmp.eq.s32.totalorder %v304, 0
        %v501 = vstv %s300
        %v502 = vsel %vm500, %v501, 0.0
        %v503 = vadd.f32 %v502, 0.0
        %vm504 = vcmp.eq.s32.totalorder %v304, 1
        %v505 = vsel %vm504, 256.0, 0.0
        %v506 = vadd.f32 %v503, %v505
        %vm507 = vcmp.eq.s32.totalorder %v304, 2
        %v508 = vstv %s369
        %v509 = vsel %vm507, %v508, 0.0
        %v510 = vadd.f32 %v506, %v509
        %vm511 = vcmp.eq.s32.totalorder %v304, 3
        %v512 = vsel %vm511, 256.0, 0.0
        %v513 = vadd.f32 %v510, %v512
        %vm514 = vcmp.eq.s32.totalorder %v304, 4
        %v515 = vstv %s412
        %v516 = vsel %vm514, %v515, 0.0
        %v517 = vadd.f32 %v513, %v516
        %vm518 = vcmp.eq.s32.totalorder %v304, 5
        %v519 = vsel %vm518, 64.0, 0.0
        %v520 = vadd.f32 %v517, %v519
        %vm521 = vcmp.eq.s32.totalorder %v304, 6
        %v522 = vstv %s456
        %v523 = vsel %vm521, %v522, 0.0
        %v524 = vadd.f32 %v520, %v523
        %vm525 = vcmp.eq.s32.totalorder %v304, 7
        %v526 = vsel %vm525, 16.0, 0.0
        %v527 = vadd.f32 %v524, %v526
        %vm528 = vcmp.eq.s32.totalorder %v304, 8
        %v529 = vstv %s499
        %v530 = vsel %vm528, %v529, 0.0
        %v531 = vadd.f32 %v527, %v530
        %vm532 = vcmp.eq.s32.totalorder %v304, 9
        %v533 = vsel %vm532, 4.0, 0.0
        %v534 = vadd.f32 %v531, %v533
        %535 = vst [vmem:[%s199] sm:$0x1] %v534
        %p536 = scmp.lt.s32.totalorder %s19, 1
        %s537 = scalar_select %p536, %s19, 1
        %s538 = scalar_lea.vmem %s2, %s537
        // Predicated region
        $region37: #{scale_and_shift_invariant_loss.1} parent=27 // pred_check
          %p539 = pneg %p89
        $region38: #{scale_and_shift_invariant_loss.1} parent=27 // pred_check_branch
          %541 = sbr.rel (%p539) target = $region40
        $region39: #{scale_and_shift_invariant_loss.1} parent=27 // pred_region
          _
        $region40: #{scale_and_shift_invariant_loss.1} parent=27 // pred_fallthru
          _
      $region28: #{scale_and_shift_invariant_loss.1} parent=5 // pred_fallthru
        _
      %p542 = scmp.le.s32.totalorder 2, %s14
      // Predicated region
      $region41: #{scale_and_shift_invariant_loss.1} parent=5 // pred_check
        %p543 = pneg %p542
      $region42: #{scale_and_shift_invariant_loss.1} parent=5 // pred_check_branch
        %545 = sbr.rel (%p543) target = $region44
      $region43: #{scale_and_shift_invariant_loss.1} parent=5 // pred_region
        %s546 = ssub.s32 %s14, 2
        // Predicated region
        $region45: #{scale_and_shift_invariant_loss.1} parent=43 // pred_check
          %p547 = pneg %p95
        $region46: #{scale_and_shift_invariant_loss.1} parent=43 // pred_check_branch
          %549 = sbr.rel (%p547) target = $region48
        $region47: #{scale_and_shift_invariant_loss.1} parent=43 // pred_region
          %p550 = scmp.lt.s32.totalorder %s20, 1
          %s551 = scalar_select %p550, %s20, 1
          %s552 = scalar_lea.vmem %s2, %s551
        $region48: #{scale_and_shift_invariant_loss.1} parent=43 // pred_fallthru
          _
      $region44: #{scale_and_shift_invariant_loss.1} parent=5 // pred_fallthru
        _
    $region6: #{scale_and_shift_invariant_loss.1} parent=1 // loop_footer
      %s18 = sadd.s32 1, %s14
    $region7: #{scale_and_shift_invariant_loss.1} parent=1 // loop_footer_branch
      %13 = sbr.rel target = $region3
    $region8: #{scale_and_shift_invariant_loss.1} parent=1 // loop_exit
      _
    %553 = vsyncpa [#allocation4], 1
    %s554 = scalar_lea.sflag [#allocation4], 1
    %555 = vsyncpa %s554, 1
    %556 = vsyncpa [#allocation6], 1
    %s557 = scalar_lea.sflag [#allocation6], 1
    %558 = vsyncpa %s557, 1

</llo_original>
